<compile_context>
chip_gen: v7x
topology: tpu7x:2x2x1
jax: 0.10.0
libtpu: 0.0.40
codegen_flags: <defaults>
</compile_context>

<pallas_src>
import functools

import jax
import jax.numpy as jnp
from jax.experimental import pallas as pl
from jax.experimental.pallas import tpu as pltpu


# ---------------------------------------------------------------------------
# Config (mirrors the fields the PyTorch module reads)
# ---------------------------------------------------------------------------
class _NS:
    def __init__(self, **kw):
        self.__dict__.update(kw)


CONFIG = _NS(
    rnn="GRU",
    enc=_NS(dim=16, lyr=2, bid=1),   # enc feature = 16 * 2 * (1+1) = 64
    sch=_NS(dim=64),                 # i_dim = 64 + 64 = 128
    cls=_NS(dim=128, lyr=2, drp=0.1),
)


# ---------------------------------------------------------------------------
# Pallas kernel: fused (tile+concat) + (Linear -> ReLU) * cls.lyr + VPU head
# ---------------------------------------------------------------------------
def _make_mlp_kernel(num_hidden_layers, enc_feat):
    def kernel(*refs):
        # refs = (enc, sch, w1, b1, [w2, b2, ...], w_out, b_out, o)
        enc_ref, sch_ref = refs[0], refs[1]
        o_ref = refs[-1]
        b_out_ref = refs[-2]           # (1, 1) f32 scalar in SMEM
        w_out_ref = refs[-3]           # (1, cls_dim) f32 row (VPU head)
        wb = refs[2:-3]                # [w1, b1, w2, b2, ...]

        w1_ref, b1_ref = wb[0], wb[1]
        sch_dim = sch_ref.shape[1]
        cdt = w1_ref.dtype             # bf16 compute dtype for the MXU

        # Fused first layer: cls_in @ W1 == enc @ W1_top + sch @ W1_bot
        # (enc_feat == 64 is sublane/tile aligned for both f32 and bf16).
        w1_top = w1_ref[pl.ds(0, enc_feat), :]           # (enc_feat, cls_dim)
        w1_bot = w1_ref[pl.ds(enc_feat, sch_dim), :]     # (sch_dim,  cls_dim)

        enc_contrib = jnp.dot(enc_ref[...].astype(cdt), w1_top,
                              preferred_element_type=jnp.float32)   # (1, cls_dim)
        h = jnp.dot(sch_ref[...].astype(cdt), w1_bot,
                    preferred_element_type=jnp.float32)             # (rows, cls_dim)
        h = jnp.maximum(h + enc_contrib + b1_ref[...], 0.0)         # f32 ReLU/bias

        for l in range(1, num_hidden_layers):
            w_ref, b_ref = wb[2 * l], wb[2 * l + 1]
            h = jnp.dot(h.astype(w_ref.dtype), w_ref[...],
                        preferred_element_type=jnp.float32) + b_ref[...]
            h = jnp.maximum(h, 0.0)

        # Head (cls_dim -> 1) on the VPU/XLU: mul + lane reduce, scalar bias.
        out = jnp.sum(h * w_out_ref[...], axis=-1, keepdims=True) + b_out_ref[0, 0]
        o_ref[...] = out.astype(o_ref.dtype)

    return kernel


def mlp_pallas(enc_flat, sch_o, weights, biases):
    """enc_flat: (1, enc_feat) f32.  sch_o: (N, sch_dim) f32.

    weights[:-1]: hidden (in, out) bf16;  weights[-1]: head row (1, cls_dim) f32.
    biases[:-1]:  (1, out) f32;           biases[-1]:  (1, 1) f32.
    """
    num_hidden = len(weights) - 1
    rows = sch_o.shape[0] * enc_flat.shape[0]   # module semantics require B == 1
    enc_feat = enc_flat.shape[1]

    hidden_params = []
    for w, b in zip(weights[:num_hidden], biases[:num_hidden]):
        hidden_params += [w, b]

    vmem = pl.BlockSpec(memory_space=pltpu.MemorySpace.VMEM)
    smem = pl.BlockSpec(memory_space=pltpu.MemorySpace.SMEM)

    return pl.pallas_call(
        _make_mlp_kernel(num_hidden, enc_feat),
        out_shape=jax.ShapeDtypeStruct((rows, 1), jnp.float32),
        in_specs=[vmem, vmem] + [vmem] * len(hidden_params) + [vmem, smem],
        out_specs=vmem,
    )(enc_flat, sch_o, *hidden_params, weights[-1], biases[-1])


# ---------------------------------------------------------------------------
# Parameter construction (deterministic, matches nn.Linear shapes, (in,out) layout)
# ---------------------------------------------------------------------------
def init_params(config, key):
    enc_feat = config.enc.dim * config.enc.lyr * (1 + config.enc.bid)
    i_dim = enc_feat + config.sch.dim
    o_dim = config.cls.dim

    weights, biases = [], []
    d_in = i_dim
    for _ in range(config.cls.lyr):
        key, kw, kb = jax.random.split(key, 3)
        w = jax.random.normal(kw, (d_in, o_dim), jnp.float32) * 0.05
        weights.append(w.astype(jnp.bfloat16))                    # bf16 weights, f32 acc
        biases.append(jax.random.normal(kb, (1, o_dim), jnp.float32) * 0.05)
        d_in = o_dim
    key, kw, kb = jax.random.split(key, 3)
    # Head kept as an f32 row vector (1, cls_dim) for the VPU reduction.
    weights.append(jax.random.normal(kw, (1, d_in), jnp.float32) * 0.05)
    biases.append(jax.random.normal(kb, (1, 1), jnp.float32) * 0.05)
    return weights, biases


# ---------------------------------------------------------------------------
# Forward pass (all hot-path work inside a single gridless Pallas kernel)
# ---------------------------------------------------------------------------
@functools.partial(jax.jit, static_argnames=("rnn_type",))
def classifier_forward(enc_h, sch_o, params, rnn_type="GRU"):
    weights, biases = params
    if rnn_type == "LSTM":
        enc_h = enc_h[0]
    B = enc_h.shape[1]
    # (L*D, B, H) -> (B, L*D*H).  With B == 1 (required by the module's concat)
    # this is metadata-only; the N-fold tile + concat is fused into the kernel.
    enc_flat = jnp.transpose(enc_h, (1, 0, 2)).reshape(B, -1).astype(jnp.float32)
    out = mlp_pallas(enc_flat, sch_o.astype(jnp.float32), weights, biases)  # (N*B, 1)
    return out.reshape(1, -1)


def reference_forward(enc_h, sch_o, params, rnn_type="GRU"):
    """Pure-JAX reference with the same numerics (bf16 hidden matmuls, f32 acc)."""
    weights, biases = params
    if rnn_type == "LSTM":
        enc_h = enc_h[0]
    B = enc_h.shape[1]
    x = jnp.transpose(enc_h, (1, 0, 2)).reshape(B, -1)
    x = jnp.tile(x, (sch_o.shape[0], 1))
    h = jnp.concatenate([x, sch_o], axis=1).astype(jnp.float32)
    for w, b in zip(weights[:-1], biases[:-1]):
        h = jnp.dot(h.astype(w.dtype), w, preferred_element_type=jnp.float32) + b
        h = jnp.maximum(h, 0.0)
    w_out, b_out = weights[-1], biases[-1]
    h = jnp.sum(h * w_out, axis=-1, keepdims=True) + b_out[0, 0]
    return h.reshape(1, -1)


if __name__ == "__main__":
    cfg = CONFIG
    key = jax.random.PRNGKey(0)
    key, k_enc, k_sch, k_par = jax.random.split(key, 4)

    # enc_h: (num_layers * num_directions, batch, enc.dim) = (4, 1, 16)
    LD = cfg.enc.lyr * (1 + cfg.enc.bid)
    B = 1   # the module's concat requires batch == 1
    N = 8   # number of schedule rows
    enc_h = jax.random.normal(k_enc, (LD, B, cfg.enc.dim), jnp.float32)
    sch_o = jax.random.normal(k_sch, (N, cfg.sch.dim), jnp.float32)

    params = init_params(cfg, k_par)

    out = classifier_forward(enc_h, sch_o, params, rnn_type=cfg.rnn)
    out = jax.block_until_ready(out)

    ref = reference_forward(enc_h, sch_o, params, rnn_type=cfg.rnn)
    assert out.shape == (1, N * B), out.shape
    assert jnp.allclose(out, ref, atol=2e-3, rtol=2e-3), (out, ref)

    print("KERNEL_OK")
</pallas_src>

<mosaic_0001>
module attributes {stable_mosaic.version = 11 : i64} {
  func.func @kernel(%arg0: memref<1x64xf32, #tpu.memory_space<vmem>>, %arg1: memref<8x64xf32, #tpu.memory_space<vmem>>, %arg2: memref<128x128xbf16, #tpu.memory_space<vmem>>, %arg3: memref<1x128xf32, #tpu.memory_space<vmem>>, %arg4: memref<128x128xbf16, #tpu.memory_space<vmem>>, %arg5: memref<1x128xf32, #tpu.memory_space<vmem>>, %arg6: memref<1x128xf32, #tpu.memory_space<vmem>>, %arg7: memref<1x1xf32, #tpu.memory_space<smem>>, %arg8: memref<8x1xf32, #tpu.memory_space<vmem>>) attributes {dimension_semantics = [], scalar_prefetch = 0 : i64, scratch_operands = 0 : i64, tpu.core_type = #tpu.core_type<tc>} {
    %c0 = arith.constant 0 : index
    %c0_0 = arith.constant 0 : index
    %0 = vector.load %arg2[%c0, %c0_0] : memref<128x128xbf16, #tpu.memory_space<vmem>>, vector<64x128xbf16>
    %c64 = arith.constant 64 : index
    %c0_1 = arith.constant 0 : index
    %1 = vector.load %arg2[%c64, %c0_1] : memref<128x128xbf16, #tpu.memory_space<vmem>>, vector<64x128xbf16>
    %c0_2 = arith.constant 0 : index
    %c0_3 = arith.constant 0 : index
    %2 = vector.load %arg0[%c0_2, %c0_3] : memref<1x64xf32, #tpu.memory_space<vmem>>, vector<1x64xf32>
    %3 = arith.truncf %2 : vector<1x64xf32> to vector<1x64xbf16>
    %cst = arith.constant dense<0.000000e+00> : vector<1x128xf32>
    %4 = tpu.matmul %3, %0, %cst {dimension_numbers = #tpu.dot_dimension_numbers<[1], [0], [0], [1], [0, 0, 1, 1], [], []>} : vector<1x64xbf16>, vector<64x128xbf16>, vector<1x128xf32> -> vector<1x128xf32>
    %c0_4 = arith.constant 0 : index
    %c0_5 = arith.constant 0 : index
    %5 = vector.load %arg1[%c0_4, %c0_5] : memref<8x64xf32, #tpu.memory_space<vmem>>, vector<8x64xf32>
    %6 = arith.truncf %5 : vector<8x64xf32> to vector<8x64xbf16>
    %cst_6 = arith.constant dense<0.000000e+00> : vector<8x128xf32>
    %7 = tpu.matmul %6, %1, %cst_6 {dimension_numbers = #tpu.dot_dimension_numbers<[1], [0], [0], [1], [0, 0, 1, 1], [], []>} : vector<8x64xbf16>, vector<64x128xbf16>, vector<8x128xf32> -> vector<8x128xf32>
    %8 = vector.broadcast %4 : vector<1x128xf32> to vector<8x128xf32>
    %9 = arith.addf %7, %8 : vector<8x128xf32>
    %c0_7 = arith.constant 0 : index
    %c0_8 = arith.constant 0 : index
    %10 = vector.load %arg3[%c0_7, %c0_8] : memref<1x128xf32, #tpu.memory_space<vmem>>, vector<1x128xf32>
    %11 = vector.broadcast %10 : vector<1x128xf32> to vector<8x128xf32>
    %12 = arith.addf %9, %11 : vector<8x128xf32>
    %cst_9 = arith.constant 0.000000e+00 : f32
    %13 = vector.broadcast %cst_9 : f32 to vector<8x128xf32>
    %14 = arith.maximumf %12, %13 : vector<8x128xf32>
    %15 = arith.truncf %14 : vector<8x128xf32> to vector<8x128xbf16>
    %c0_10 = arith.constant 0 : index
    %c0_11 = arith.constant 0 : index
    %16 = vector.load %arg4[%c0_10, %c0_11] : memref<128x128xbf16, #tpu.memory_space<vmem>>, vector<128x128xbf16>
    %cst_12 = arith.constant dense<0.000000e+00> : vector<8x128xf32>
    %17 = tpu.matmul %15, %16, %cst_12 {dimension_numbers = #tpu.dot_dimension_numbers<[1], [0], [0], [1], [0, 0, 1, 1], [], []>} : vector<8x128xbf16>, vector<128x128xbf16>, vector<8x128xf32> -> vector<8x128xf32>
    %c0_13 = arith.constant 0 : index
    %c0_14 = arith.constant 0 : index
    %18 = vector.load %arg5[%c0_13, %c0_14] : memref<1x128xf32, #tpu.memory_space<vmem>>, vector<1x128xf32>
    %19 = vector.broadcast %18 : vector<1x128xf32> to vector<8x128xf32>
    %20 = arith.addf %17, %19 : vector<8x128xf32>
    %cst_15 = arith.constant 0.000000e+00 : f32
    %21 = vector.broadcast %cst_15 : f32 to vector<8x128xf32>
    %22 = arith.maximumf %20, %21 : vector<8x128xf32>
    %c0_16 = arith.constant 0 : index
    %c0_17 = arith.constant 0 : index
    %23 = vector.load %arg6[%c0_16, %c0_17] : memref<1x128xf32, #tpu.memory_space<vmem>>, vector<1x128xf32>
    %24 = vector.broadcast %23 : vector<1x128xf32> to vector<8x128xf32>
    %25 = arith.mulf %22, %24 : vector<8x128xf32>
    %cst_18 = arith.constant dense<0.000000e+00> : vector<8xf32>
    %26 = vector.multi_reduction <add>, %25, %cst_18 [1] : vector<8x128xf32> to vector<8xf32>
    %27 = vector.shape_cast %26 : vector<8xf32> to vector<8x1xf32>
    %c0_19 = arith.constant 0 : index
    %c0_20 = arith.constant 0 : index
    %28 = memref.load %arg7[%c0_19, %c0_20] : memref<1x1xf32, #tpu.memory_space<smem>>
    %29 = vector.broadcast %28 : f32 to vector<8x1xf32>
    %30 = arith.addf %27, %29 : vector<8x1xf32>
    %c0_21 = arith.constant 0 : index
    %c0_22 = arith.constant 0 : index
    %31 = vector.load %arg8[%c0_21, %c0_22] : memref<8x1xf32, #tpu.memory_space<vmem>>, vector<8x1xf32>
    tpu.vector_store %arg8[%c0_21, %c0_22], %30 {strides = array<i32>} : memref<8x1xf32, #tpu.memory_space<vmem>>, vector<8x1xf32>,
    return
  }
}

</mosaic_0001>

<llo_original>
// kernel: classifier_forward.1
$region0: #{classifier_forward.1}
  #allocation0 [shape = 'u32[]', space=smem, size = 0x4, offset = 0x4, fixed_abs, tag = 'smem constant byte address 0x4 - core index']
  #allocation1 [shape = 'u32[144,128]{1,0:T(1,128)}', space=vmem, size = 0x12000, scoped, tag = 'internal scratch']
  #allocation2 [shape = 'f32[1,1]{1,0:T(1,128)S(6)}', space=smem, size = 0x200, scoped, tag = 'scoped memory for classifier_forward.1']
  %s0 = inlined_call_operand.vmem [shape: f32[1,64], index: 0, kind: input, shape index: {}]
  %s1 = inlined_call_operand.vmem [shape: f32[8,64], index: 1, kind: input, shape index: {}]
  %s2 = inlined_call_operand.hbm [shape: bf16[128,128], index: 2, kind: input, shape index: {}]
  %s3 = inlined_call_operand.vmem [shape: f32[1,128], index: 3, kind: input, shape index: {}]
  %s4 = inlined_call_operand.hbm [shape: bf16[128,128], index: 4, kind: input, shape index: {}]
  %s5 = inlined_call_operand.vmem [shape: f32[1,128], index: 5, kind: input, shape index: {}]
  %s6 = inlined_call_operand.vmem [shape: f32[1,128], index: 6, kind: input, shape index: {}]
  %s7 = inlined_call_operand.<no memory space> [shape: f32[1,1], index: 7, kind: input, shape index: {}]
  %s8 = inlined_call_operand.vmem [shape: f32[8,1], index: 8, kind: output, shape index: {}]
  %s9 = sld [smem:[#allocation0]]
  $region50: #{classifier_forward.1} parent=0
    _
  %s11 = ssub.s32 1, %s9
  %s12 = scalar_select 0, %s11, %s9
  %13 = sst [smem:[#allocation2]] %s7
  $region1: #{classifier_forward.1} parent=0
    #allocation3 [shape = 'u8[32768]{0}', space=vmem, size = 0x8000, scoped, tag = 'input window, operand 2, single buffered']
    #allocation4 [shape = 's32[1]{0}', space=sflag, size = 0x4, scoped, tag = 'scoped memory for classifier_forward.1']
    #allocation5 [shape = 'u8[32768]{0}', space=vmem, size = 0x8000, scoped, tag = 'input window, operand 4, single buffered']
    #allocation6 [shape = 's32[1]{0}', space=sflag, size = 0x4, scoped, tag = 'scoped memory for classifier_forward.1']
    %14 = vsyncpa [#allocation4], 0
    %15 = vsyncpa [#allocation6], 0
    // Predicated region
    $region2: #{classifier_forward.1} parent=1 // pred_check
      _
    $region3: #{classifier_forward.1} parent=1 // pred_check_branch
      %17 = sbr.rel (0) target = $region5
    $region4: #{classifier_forward.1} parent=1 // pred_region
      _
    $region5: #{classifier_forward.1} parent=1 // pred_fallthru
      _
    // Predicated region
    $region6: #{classifier_forward.1} parent=1 // pred_check
      _
    $region7: #{classifier_forward.1} parent=1 // pred_check_branch
      %19 = sbr.rel (0) target = $region9
    $region8: #{classifier_forward.1} parent=1 // pred_region
      _
    $region9: #{classifier_forward.1} parent=1 // pred_fallthru
      _
    // Predicated region
    $region10: #{classifier_forward.1} parent=1 // pred_check
      _
    $region11: #{classifier_forward.1} parent=1 // pred_check_branch
      %21 = sbr.rel (0) target = $region13
    $region12: #{classifier_forward.1} parent=1 // pred_region
      %s23 = ssub.s32 1024, 1024
      %24 = vsyncadd [#allocation4], %s23
      %s25 = sshll.u32 [#allocation3], 4
      %s26 = int_to_ptr.vmem [resolvable:$true] %s25
      %31 = dma.hbm_to_vmem [thread:$0]  %s2, 1024, %s26, [#allocation4], 64, 64, 4
    $region13: #{classifier_forward.1} parent=1 // pred_fallthru
      _
    // Predicated region
    $region14: #{classifier_forward.1} parent=1 // pred_check
      _
    $region15: #{classifier_forward.1} parent=1 // pred_check_branch
      %33 = sbr.rel (0) target = $region17
    $region16: #{classifier_forward.1} parent=1 // pred_region
      _
    $region17: #{classifier_forward.1} parent=1 // pred_fallthru
      _
    // Predicated region
    $region18: #{classifier_forward.1} parent=1 // pred_check
      _
    $region19: #{classifier_forward.1} parent=1 // pred_check_branch
      %35 = sbr.rel (0) target = $region21
    $region20: #{classifier_forward.1} parent=1 // pred_region
      %s37 = ssub.s32 1024, 1024
      %38 = vsyncadd [#allocation6], %s37
      %s39 = sshll.u32 [#allocation5], 4
      %s40 = int_to_ptr.vmem [resolvable:$true] %s39
      %45 = dma.hbm_to_vmem [thread:$0]  %s4, 1024, %s40, [#allocation6], 64, 64, 4
    $region21: #{classifier_forward.1} parent=1 // pred_fallthru
      _
    // Predicated region
    $region22: #{classifier_forward.1} parent=1 // pred_check
      _
    $region23: #{classifier_forward.1} parent=1 // pred_check_branch
      %47 = sbr.rel (0) target = $region25
    $region24: #{classifier_forward.1} parent=1 // pred_region
      _
    $region25: #{classifier_forward.1} parent=1 // pred_fallthru
      _
    // Predicated region
    $region26: #{classifier_forward.1} parent=1 // pred_check
      _
    $region27: #{classifier_forward.1} parent=1 // pred_check_branch
      %49 = sbr.rel (0) target = $region29
    $region28: #{classifier_forward.1} parent=1 // pred_region
      _
    $region29: #{classifier_forward.1} parent=1 // pred_fallthru
      _
    // Predicated region
    $region30: #{classifier_forward.1} parent=1 // pred_check
      _
    $region31: #{classifier_forward.1} parent=1 // pred_check_branch
      %51 = sbr.rel (0) target = $region33
    $region32: #{classifier_forward.1} parent=1 // pred_region
      _
    $region33: #{classifier_forward.1} parent=1 // pred_fallthru
      _
    // Predicated region
    $region34: #{classifier_forward.1} parent=1 // pred_check
      _
    $region35: #{classifier_forward.1} parent=1 // pred_check_branch
      %53 = sbr.rel (0) target = $region37
    $region36: #{classifier_forward.1} parent=1 // pred_region
      %54 = dma.done [#allocation4], 1024
    $region37: #{classifier_forward.1} parent=1 // pred_fallthru
      _
    // Predicated region
    $region38: #{classifier_forward.1} parent=1 // pred_check
      _
    $region39: #{classifier_forward.1} parent=1 // pred_check_branch
      %56 = sbr.rel (0) target = $region41
    $region40: #{classifier_forward.1} parent=1 // pred_region
      %57 = dma.done [#allocation6], 1024
    $region41: #{classifier_forward.1} parent=1 // pred_fallthru
      _
    %v59 = vld [vmem:[#allocation3] sm:$0xf]
    %v60 = vld [vmem:[#allocation3 + $0x4] sm:$0xf]
    %v61 = vld [vmem:[#allocation3 + $0x8] sm:$0xf]
    %v62 = vld [vmem:[#allocation3 + $0xc] sm:$0xf]
    %v63 = vld [vmem:[#allocation3 + $0x10] sm:$0xf]
    %v64 = vld [vmem:[#allocation3 + $0x14] sm:$0xf]
    %v65 = vld [vmem:[#allocation3 + $0x18] sm:$0xf]
    %v66 = vld [vmem:[#allocation3 + $0x1c] sm:$0xf]
    %v67 = vld [vmem:[#allocation3 + $0x20] sm:$0xf]
    %v68 = vld [vmem:[#allocation3 + $0x24] sm:$0xf]
    %v69 = vld [vmem:[#allocation3 + $0x28] sm:$0xf]
    %v70 = vld [vmem:[#allocation3 + $0x2c] sm:$0xf]
    %v71 = vld [vmem:[#allocation3 + $0x30] sm:$0xf]
    %v72 = vld [vmem:[#allocation3 + $0x34] sm:$0xf]
    %v73 = vld [vmem:[#allocation3 + $0x38] sm:$0xf]
    %v74 = vld [vmem:[#allocation3 + $0x3c] sm:$0xf]
    %v75 = vld [vmem:[%s0] sm:$0x1]
    %v76 = vpack.c.bf16 %v75, %v75
    %v85 = vunpack.c.l.b16 %v59
    %v86 = vunpack.c.l.b16 %v60
    %v87 = vunpack.c.l.b16 %v61
    %v88 = vunpack.c.l.b16 %v62
    %v89 = vunpack.c.l.b16 %v63
    %v90 = vunpack.c.l.b16 %v64
    %v91 = vunpack.c.l.b16 %v65
    %v92 = vunpack.c.l.b16 %v66
    %v93 = vpack.c.b16 %v86, %v85
    %v94 = vpack.c.b16 %v88, %v87
    %v95 = vpack.c.b16 %v90, %v89
    %v96 = vpack.c.b16 %v92, %v91
    %vm101 = vcmask 523264
    %v103 = vsel %vm101, %v76, 0
    %105 = vmatprep.subr.bf16.mxu0 0
    %106 = vmatpush1.bf16.msra.mxu0 %v93
    %107 = vmatprep.subr.bf16.mxu0 0
    %108 = vmatpush1.bf16.msra.mxu0 %v94
    %109 = vmatprep.subr.bf16.mxu0 0
    %110 = vmatpush1.bf16.msra.mxu0 %v95
    %111 = vmatprep.subr.bf16.mxu0 0
    %112 = vmatpush1.bf16.msra.mxu0 %v96
    %113 = vmatprep.subr.bf16.mxu0 0
    %114 = vmatpush1.bf16.msra.mxu0 0
    %115 = vmatprep.subr.bf16.mxu0 0
    %116 = vmatpush1.bf16.msra.mxu0 0
    %117 = vmatprep.subr.bf16.mxu0 0
    %118 = vmatpush1.bf16.msra.mxu0 0
    %119 = vmatprep.subr.bf16.mxu0 0
    %120 = vmatpush1.bf16.msra.mxu0 0
    %121 = vmatprep.subr.bf16.mxu0 0
    %122 = vmatpush1.bf16.msra.mxu0 0
    %123 = vmatprep.subr.bf16.mxu0 0
    %124 = vmatpush1.bf16.msra.mxu0 0
    %125 = vmatprep.subr.bf16.mxu0 0
    %126 = vmatpush1.bf16.msra.mxu0 0
    %127 = vmatprep.subr.bf16.mxu0 0
    %128 = vmatpush1.bf16.msra.mxu0 0
    %129 = vmatprep.subr.bf16.mxu0 0
    %130 = vmatpush1.bf16.msra.mxu0 0
    %131 = vmatprep.subr.bf16.mxu0 0
    %132 = vmatpush1.bf16.msra.mxu0 0
    %133 = vmatprep.subr.bf16.mxu0 0
    %134 = vmatpush1.bf16.msra.mxu0 0
    %135 = vmatprep.subr.bf16.mxu0 0
    %136 = vmatpush1.bf16.msra.mxu0 0
    %137 = vmatprep.mubr.bf16.mxu0 0
    %138 = vmatmul.mubr.bf16.gmra.mrb[0].mxu0 %v103
    %v139 = vpop.f32.mrb[0].mxu0
    %v140 = vadd.f32 0.0, %v139
    %v141 = vpop.f32.mrb[0].mxu0
    %v142 = vpop.f32.mrb[0].mxu0
    %v143 = vpop.f32.mrb[0].mxu0
    %144 = vdwg.mxu0
    %v145 = vld [vmem:[%s1] sm:$0xff]
    %v146 = vpack.c.bf16 %v145, %v145
    %v147 = vlaneseq
    %v148 = vshrl.u32 %v147, 7
    %v149 = vsub.s32 0, %v148
    %v150 = vrot.slane %v140, %v149
    %v159 = vunpack.c.l.b16 %v67
    %v160 = vunpack.c.l.b16 %v68
    %v161 = vunpack.c.l.b16 %v69
    %v162 = vunpack.c.l.b16 %v70
    %v163 = vunpack.c.l.b16 %v71
    %v164 = vunpack.c.l.b16 %v72
    %v165 = vunpack.c.l.b16 %v73
    %v166 = vunpack.c.l.b16 %v74
    %v167 = vpack.c.b16 %v160, %v159
    %v168 = vpack.c.b16 %v162, %v161
    %v169 = vpack.c.b16 %v164, %v163
    %v170 = vpack.c.b16 %v166, %v165
    %v176 = vsel %vm101, %v146, 0
    %178 = vmatprep.subr.bf16.mxu0 0
    %179 = vmatpush1.bf16.msra.mxu0 %v167
    %180 = vmatprep.subr.bf16.mxu0 0
    %181 = vmatpush1.bf16.msra.mxu0 %v168
    %182 = vmatprep.subr.bf16.mxu0 0
    %183 = vmatpush1.bf16.msra.mxu0 %v169
    %184 = vmatprep.subr.bf16.mxu0 0
    %185 = vmatpush1.bf16.msra.mxu0 %v170
    %186 = vmatprep.subr.bf16.mxu0 0
    %187 = vmatpush1.bf16.msra.mxu0 0
    %188 = vmatprep.subr.bf16.mxu0 0
    %189 = vmatpush1.bf16.msra.mxu0 0
    %190 = vmatprep.subr.bf16.mxu0 0
    %191 = vmatpush1.bf16.msra.mxu0 0
    %192 = vmatprep.subr.bf16.mxu0 0
    %193 = vmatpush1.bf16.msra.mxu0 0
    %194 = vmatprep.subr.bf16.mxu0 0
    %195 = vmatpush1.bf16.msra.mxu0 0
    %196 = vmatprep.subr.bf16.mxu0 0
    %197 = vmatpush1.bf16.msra.mxu0 0
    %198 = vmatprep.subr.bf16.mxu0 0
    %199 = vmatpush1.bf16.msra.mxu0 0
    %200 = vmatprep.subr.bf16.mxu0 0
    %201 = vmatpush1.bf16.msra.mxu0 0
    %202 = vmatprep.subr.bf16.mxu0 0
    %203 = vmatpush1.bf16.msra.mxu0 0
    %204 = vmatprep.subr.bf16.mxu0 0
    %205 = vmatpush1.bf16.msra.mxu0 0
    %206 = vmatprep.subr.bf16.mxu0 0
    %207 = vmatpush1.bf16.msra.mxu0 0
    %208 = vmatprep.subr.bf16.mxu0 0
    %209 = vmatpush1.bf16.msra.mxu0 0
    %210 = vmatprep.mubr.bf16.mxu0 0
    %211 = vmatmul.mubr.bf16.gmra.mrb[0].mxu0 %v176
    %v212 = vpop.f32.mrb[0].mxu0
    %v213 = vadd.f32 %v150, %v212
    %v214 = vpop.f32.mrb[0].mxu0
    %v215 = vpop.f32.mrb[0].mxu0
    %v216 = vpop.f32.mrb[0].mxu0
    %217 = vdwg.mxu0
    %v218 = vld [vmem:[%s3] sm:$0x1]
    %v220 = vlaneseq
    %v221 = vshrl.u32 %v220, 7
    %v222 = vsub.s32 0, %v221
    %v223 = vrot.slane %v218, %v222
    %v225 = vadd.f32 %v213, %v223
    %v226 = vmax.f32 %v225, 0.0
    %v227 = vpack.c.bf16 %v226, %v226
    %v228 = vld [vmem:[#allocation5] sm:$0xf]
    %v229 = vld [vmem:[#allocation5 + $0x4] sm:$0xf]
    %v230 = vld [vmem:[#allocation5 + $0x8] sm:$0xf]
    %v231 = vld [vmem:[#allocation5 + $0xc] sm:$0xf]
    %v232 = vld [vmem:[#allocation5 + $0x10] sm:$0xf]
    %v233 = vld [vmem:[#allocation5 + $0x14] sm:$0xf]
    %v234 = vld [vmem:[#allocation5 + $0x18] sm:$0xf]
    %v235 = vld [vmem:[#allocation5 + $0x1c] sm:$0xf]
    %v236 = vld [vmem:[#allocation5 + $0x20] sm:$0xf]
    %v237 = vld [vmem:[#allocation5 + $0x24] sm:$0xf]
    %v238 = vld [vmem:[#allocation5 + $0x28] sm:$0xf]
    %v239 = vld [vmem:[#allocation5 + $0x2c] sm:$0xf]
    %v240 = vld [vmem:[#allocation5 + $0x30] sm:$0xf]
    %v241 = vld [vmem:[#allocation5 + $0x34] sm:$0xf]
    %v242 = vld [vmem:[#allocation5 + $0x38] sm:$0xf]
    %v243 = vld [vmem:[#allocation5 + $0x3c] sm:$0xf]
    %v244 = vld [vmem:[%s5] sm:$0x1]
    %v246 = vlaneseq
    %v247 = vshrl.u32 %v246, 7
    %v248 = vsub.s32 0, %v247
    %v249 = vrot.slane %v244, %v248
    %v267 = vunpack.c.l.b16 %v228
    %v268 = vunpack.c.l.b16 %v229
    %v269 = vunpack.c.l.b16 %v230
    %v270 = vunpack.c.l.b16 %v231
    %v271 = vunpack.c.l.b16 %v232
    %v272 = vunpack.c.l.b16 %v233
    %v273 = vunpack.c.l.b16 %v234
    %v274 = vunpack.c.l.b16 %v235
    %v275 = vunpack.c.l.b16 %v236
    %v276 = vunpack.c.l.b16 %v237
    %v277 = vunpack.c.l.b16 %v238
    %v278 = vunpack.c.l.b16 %v239
    %v279 = vunpack.c.l.b16 %v240
    %v280 = vunpack.c.l.b16 %v241
    %v281 = vunpack.c.l.b16 %v242
    %v282 = vunpack.c.l.b16 %v243
    %v283 = vpack.c.b16 %v268, %v267
    %v284 = vpack.c.b16 %v270, %v269
    %v285 = vpack.c.b16 %v272, %v271
    %v286 = vpack.c.b16 %v274, %v273
    %v287 = vpack.c.b16 %v276, %v275
    %v288 = vpack.c.b16 %v278, %v277
    %v289 = vpack.c.b16 %v280, %v279
    %v290 = vpack.c.b16 %v282, %v281
    %299 = vmatprep.subr.bf16.mxu0 0
    %300 = vmatpush1.bf16.msra.mxu0 %v283
    %301 = vmatprep.subr.bf16.mxu0 0
    %302 = vmatpush1.bf16.msra.mxu0 %v284
    %303 = vmatprep.subr.bf16.mxu0 0
    %304 = vmatpush1.bf16.msra.mxu0 %v285
    %305 = vmatprep.subr.bf16.mxu0 0
    %306 = vmatpush1.bf16.msra.mxu0 %v286
    %307 = vmatprep.subr.bf16.mxu0 0
    %308 = vmatpush1.bf16.msra.mxu0 %v287
    %309 = vmatprep.subr.bf16.mxu0 0
    %310 = vmatpush1.bf16.msra.mxu0 %v288
    %311 = vmatprep.subr.bf16.mxu0 0
    %312 = vmatpush1.bf16.msra.mxu0 %v289
    %313 = vmatprep.subr.bf16.mxu0 0
    %314 = vmatpush1.bf16.msra.mxu0 %v290
    %315 = vmatprep.subr.bf16.mxu0 0
    %316 = vmatpush1.bf16.msra.mxu0 0
    %317 = vmatprep.subr.bf16.mxu0 0
    %318 = vmatpush1.bf16.msra.mxu0 0
    %319 = vmatprep.subr.bf16.mxu0 0
    %320 = vmatpush1.bf16.msra.mxu0 0
    %321 = vmatprep.subr.bf16.mxu0 0
    %322 = vmatpush1.bf16.msra.mxu0 0
    %323 = vmatprep.subr.bf16.mxu0 0
    %324 = vmatpush1.bf16.msra.mxu0 0
    %325 = vmatprep.subr.bf16.mxu0 0
    %326 = vmatpush1.bf16.msra.mxu0 0
    %327 = vmatprep.subr.bf16.mxu0 0
    %328 = vmatpush1.bf16.msra.mxu0 0
    %329 = vmatprep.subr.bf16.mxu0 0
    %330 = vmatpush1.bf16.msra.mxu0 0
    %331 = vmatprep.mubr.bf16.mxu0 0
    %332 = vmatmul.mubr.bf16.gmra.mrb[0].mxu0 %v227
    %v333 = vpop.f32.mrb[0].mxu0
    %v334 = vadd.f32 %v249, %v333
    %v335 = vpop.f32.mrb[0].mxu0
    %v336 = vpop.f32.mrb[0].mxu0
    %v337 = vpop.f32.mrb[0].mxu0
    %338 = vdwg.mxu0
    %v339 = vmax.f32 %v334, 0.0
    %v340 = vld [vmem:[%s6] sm:$0x1]
    %v342 = vlaneseq
    %v343 = vshrl.u32 %v342, 7
    %v344 = vsub.s32 0, %v343
    %v345 = vrot.slane %v340, %v344
    %v347 = vmul.f32 %v339, %v345
    %348 = vadd.xlane.f32.xlu0 %v347
    %v349 = vpop.xlane.xlu0 %348
    %s350 = sld [smem:[#allocation2]]
    %v351 = vstv %s350
    %v352 = vadd.f32 %v349, %v351
    %vm353 = vcmask 7168
    %354 = vst.msk [vmem:[%s8] sm:$0xff] %vm353, %v352
    // Predicated region
    $region42: #{classifier_forward.1} parent=1 // pred_check
      _
    $region43: #{classifier_forward.1} parent=1 // pred_check_branch
      %356 = sbr.rel (0) target = $region45
    $region44: #{classifier_forward.1} parent=1 // pred_region
      _
    $region45: #{classifier_forward.1} parent=1 // pred_fallthru
      _
    // Predicated region
    $region46: #{classifier_forward.1} parent=1 // pred_check
      _
    $region47: #{classifier_forward.1} parent=1 // pred_check_branch
      %358 = sbr.rel (0) target = $region49
    $region48: #{classifier_forward.1} parent=1 // pred_region
      _
    $region49: #{classifier_forward.1} parent=1 // pred_fallthru
      _
    %359 = vsyncpa [#allocation4], 1
    %360 = vsyncpa [#allocation6], 1

</llo_original>
